<compile_context>
chip_gen: v6e
topology: v6e:2x2x1
jax: 0.10.0
libtpu: 0.0.40
codegen_flags: <defaults>
</compile_context>

<pallas_src>
import jax
import jax.numpy as jnp
from jax.experimental import pallas as pl
from jax.experimental.pallas import tpu as pltpu

# Fixed TP_module kernel (matches torch.FloatTensor([[0,1,1],[-1,0,1],[-1,-1,0]]))
_TP_KERNEL = ((0.0, 1.0, 1.0),
              (-1.0, 0.0, 1.0),
              (-1.0, -1.0, 0.0))


# -------------------- TP_module: fixed 3x3 depthwise conv, padding=1 ----------
def _tp_conv_kernel(xp_ref, o_ref):
    # xp_ref: (B*C, H+2, W+2) padded planes; o_ref: (B*C, H, W)
    BC, H, W = o_ref.shape
    xp = xp_ref[...].astype(jnp.float32)
    acc = jnp.zeros((BC, H, W), jnp.float32)
    for dy in range(3):
        for dx in range(3):
            w = _TP_KERNEL[dy][dx]
            if w != 0.0:
                # F.conv2d is cross-correlation: out[i,j] += w[dy,dx]*xp[i+dy, j+dx]
                acc = acc + w * xp[:, dy:dy + H, dx:dx + W]
    o_ref[...] = acc.astype(o_ref.dtype)


def tp_module(x):
    # x: (B, 3, H, W) float32, NCHW. Depthwise (per-channel) fixed conv.
    B, C, H, W = x.shape
    xp = jnp.pad(x, ((0, 0), (0, 0), (1, 1), (1, 1))).reshape(B * C, H + 2, W + 2)
    out = pl.pallas_call(
        _tp_conv_kernel,
        out_shape=jax.ShapeDtypeStruct((B * C, H, W), x.dtype),
        grid=(1,),  # single step: whole padded input is tiny (< 8 KiB)
        in_specs=[pl.BlockSpec((B * C, H + 2, W + 2), lambda i: (0, 0, 0))],
        out_specs=pl.BlockSpec((B * C, H, W), lambda i: (0, 0, 0)),
        compiler_params=pltpu.CompilerParams(
            dimension_semantics=("arbitrary",)),
    )(xp)
    return out.reshape(B, C, H, W)


# ---- fused (x_tp | rgb) @ [w_plain; w_mta] @ w_fc + b_fc  (single kernel) ----
def _fused_feature_fc_kernel(x_ref, wcat_ref, wfc_ref, b_ref, o_ref, acc_ref):
    j = pl.program_id(0)

    @pl.when(j == 0)
    def _():
        acc_ref[...] = jnp.zeros_like(acc_ref)

    # Feature slice for this N-tile: (Bp, tn) = x_cat @ w_cat[:, tile_j]
    # (bf16 x bf16 -> f32 on the MXU). This already includes feat1 + feat2
    # because x_cat = [x_tp_flat | rgb_flat] and w_cat = [[w_plain],[w_mta]].
    feat = jnp.dot(x_ref[...], wcat_ref[...], preferred_element_type=jnp.float32)
    # Partial fc contribution from this feature slice (f32 accumulation).
    acc_ref[...] += jnp.dot(feat, wfc_ref[...], preferred_element_type=jnp.float32)

    @pl.when(j == pl.num_programs(0) - 1)
    def _():
        o_ref[...] = (acc_ref[...] + b_ref[...]).astype(o_ref.dtype)


def fused_feature_fc(x_cat, w_cat, w_fc, b_fc, *, tn=2048):
    # x_cat: (Bp, 2K) bf16; w_cat: (2K, N) bf16; w_fc: (N, P) f32; b_fc: (1, P) f32
    Bp, K2 = x_cat.shape
    K2w, N = w_cat.shape
    Nw, P = w_fc.shape
    assert K2 == K2w and N == Nw and N % tn == 0 and P % 128 == 0 and Bp % 8 == 0
    return pl.pallas_call(
        _fused_feature_fc_kernel,
        out_shape=jax.ShapeDtypeStruct((Bp, P), jnp.float32),
        grid=(N // tn,),
        in_specs=[
            pl.BlockSpec((Bp, K2), lambda j: (0, 0)),   # activations, resident
            pl.BlockSpec((K2, tn), lambda j: (0, j)),   # streamed stacked weights
            pl.BlockSpec((tn, P), lambda j: (j, 0)),    # matching fc weight rows
            pl.BlockSpec((1, P), lambda j: (0, 0)),     # bias
        ],
        out_specs=pl.BlockSpec((Bp, P), lambda j: (0, 0)),  # reduction output
        scratch_shapes=[pltpu.VMEM((Bp, P), jnp.float32)],
        compiler_params=pltpu.CompilerParams(
            dimension_semantics=("arbitrary",),          # N-tiles are a reduction
            vmem_limit_bytes=48 * 1024 * 1024,           # safe on v5e/v6e/v7x
        ),
    )(x_cat, w_cat, w_fc, b_fc)


# -------------------- GocNet ---------------------------------------------------
class GocNetPallas:
    FEAT_DIM = 8192   # matches nn.Linear(8192, num_classes)
    NCLS_PAD = 128    # lane-dense padded class dim

    def __init__(self, num_classes, in_shape, key):
        assert 0 < num_classes <= self.NCLS_PAD
        B, C, H, W = in_shape
        k1, k2, k3 = jax.random.split(key, 3)
        flat = C * H * W
        scale = 0.02
        self.num_classes = num_classes
        # Deterministic synthetic stand-in parameters (no checkpoint loading).
        w_plain = scale * jax.random.normal(k1, (flat, self.FEAT_DIM), jnp.float32)
        w_mta = scale * jax.random.normal(k2, (flat, self.FEAT_DIM), jnp.float32)
        # Stacked weights: rows [0:flat] multiply x_tp_flat, rows [flat:2*flat]
        # multiply rgb_flat. Stored bf16 (kernel is HBM-bandwidth bound).
        self.w_cat = jnp.concatenate([w_plain, w_mta], axis=0).astype(jnp.bfloat16)
        w_fc = scale * jax.random.normal(k3, (self.FEAT_DIM, num_classes), jnp.float32)
        self.w_fc = jnp.pad(w_fc, ((0, 0), (0, self.NCLS_PAD - num_classes)))
        self.b_fc = jnp.zeros((1, self.NCLS_PAD), jnp.float32)

    def __call__(self, rgb_data):
        B = rgb_data.shape[0]
        # TP module (single-step Pallas conv kernel)
        x_tp = tp_module(rgb_data)
        # Concatenate both branch inputs along K so the stand-in backbones,
        # the feat1+feat2 add, and the fc collapse into ONE weight-stream kernel.
        x_cat = jnp.concatenate(
            [x_tp.reshape(B, -1), rgb_data.reshape(B, -1)], axis=1
        ).astype(jnp.bfloat16)
        bp = ((B + 7) // 8) * 8                       # pad batch to 8 sublanes
        x_cat = jnp.pad(x_cat, ((0, bp - B), (0, 0)))
        out = fused_feature_fc(x_cat, self.w_cat, self.w_fc, self.b_fc)
        return out[:B, :self.num_classes]


if __name__ == "__main__":
    key = jax.random.PRNGKey(0)
    k_in, k_param = jax.random.split(key)

    B, C, H, W = 2, 3, 16, 16
    num_classes = 10
    rgb_data = jax.random.normal(k_in, (B, C, H, W), jnp.float32)

    model = GocNetPallas(num_classes, (B, C, H, W), k_param)
    out = model(rgb_data)
    out = jax.block_until_ready(out)
    assert out.shape == (B, num_classes)
    assert out.dtype == jnp.float32
    print("KERNEL_OK")
</pallas_src>

<mosaic_0001>
module attributes {stable_mosaic.version = 11 : i64} {
  func.func @_tp_conv_kernel(%arg0: i32, %arg1: memref<6x18x18xf32, #tpu.memory_space<vmem>>, %arg2: memref<6x16x16xf32, #tpu.memory_space<vmem>>) attributes {dimension_semantics = [#tpu.dimension_semantics<arbitrary>], iteration_bounds = array<i64: 1>, scalar_prefetch = 0 : i64, scratch_operands = 0 : i64, tpu.core_type = #tpu.core_type<tc>, window_params = [{pipeline_mode = #tpu.pipeline_mode<synchronous>, transform_indices = @transform_0, window_bounds = array<i64: 6, 18, 18>}, {pipeline_mode = #tpu.pipeline_mode<synchronous>, transform_indices = @transform_1, window_bounds = array<i64: 6, 16, 16>}]} {
    %c0 = arith.constant 0 : index
    %c0_0 = arith.constant 0 : index
    %c0_1 = arith.constant 0 : index
    %0 = vector.load %arg1[%c0, %c0_0, %c0_1] : memref<6x18x18xf32, #tpu.memory_space<vmem>>, vector<6x18x18xf32>
    %cst = arith.constant 0.000000e+00 : f32
    %1 = vector.broadcast %cst : f32 to vector<6x16x16xf32>
    %2 = vector.extract_strided_slice %0 {offsets = [0, 0, 1], sizes = [6, 16, 16], strides = [1, 1, 1]} : vector<6x18x18xf32> to vector<6x16x16xf32>
    %cst_2 = arith.constant 1.000000e+00 : f32
    %3 = vector.broadcast %cst_2 : f32 to vector<6x16x16xf32>
    %4 = arith.mulf %3, %2 : vector<6x16x16xf32>
    %5 = arith.addf %1, %4 : vector<6x16x16xf32>
    %6 = vector.extract_strided_slice %0 {offsets = [0, 0, 2], sizes = [6, 16, 16], strides = [1, 1, 1]} : vector<6x18x18xf32> to vector<6x16x16xf32>
    %cst_3 = arith.constant 1.000000e+00 : f32
    %7 = vector.broadcast %cst_3 : f32 to vector<6x16x16xf32>
    %8 = arith.mulf %7, %6 : vector<6x16x16xf32>
    %9 = arith.addf %5, %8 : vector<6x16x16xf32>
    %10 = vector.extract_strided_slice %0 {offsets = [0, 1, 0], sizes = [6, 16, 16], strides = [1, 1, 1]} : vector<6x18x18xf32> to vector<6x16x16xf32>
    %cst_4 = arith.constant -1.000000e+00 : f32
    %11 = vector.broadcast %cst_4 : f32 to vector<6x16x16xf32>
    %12 = arith.mulf %11, %10 : vector<6x16x16xf32>
    %13 = arith.addf %9, %12 : vector<6x16x16xf32>
    %14 = vector.extract_strided_slice %0 {offsets = [0, 1, 2], sizes = [6, 16, 16], strides = [1, 1, 1]} : vector<6x18x18xf32> to vector<6x16x16xf32>
    %cst_5 = arith.constant 1.000000e+00 : f32
    %15 = vector.broadcast %cst_5 : f32 to vector<6x16x16xf32>
    %16 = arith.mulf %15, %14 : vector<6x16x16xf32>
    %17 = arith.addf %13, %16 : vector<6x16x16xf32>
    %18 = vector.extract_strided_slice %0 {offsets = [0, 2, 0], sizes = [6, 16, 16], strides = [1, 1, 1]} : vector<6x18x18xf32> to vector<6x16x16xf32>
    %cst_6 = arith.constant -1.000000e+00 : f32
    %19 = vector.broadcast %cst_6 : f32 to vector<6x16x16xf32>
    %20 = arith.mulf %19, %18 : vector<6x16x16xf32>
    %21 = arith.addf %17, %20 : vector<6x16x16xf32>
    %22 = vector.extract_strided_slice %0 {offsets = [0, 2, 1], sizes = [6, 16, 16], strides = [1, 1, 1]} : vector<6x18x18xf32> to vector<6x16x16xf32>
    %cst_7 = arith.constant -1.000000e+00 : f32
    %23 = vector.broadcast %cst_7 : f32 to vector<6x16x16xf32>
    %24 = arith.mulf %23, %22 : vector<6x16x16xf32>
    %25 = arith.addf %21, %24 : vector<6x16x16xf32>
    %c0_8 = arith.constant 0 : index
    %c0_9 = arith.constant 0 : index
    %c0_10 = arith.constant 0 : index
    %26 = vector.load %arg2[%c0_8, %c0_9, %c0_10] : memref<6x16x16xf32, #tpu.memory_space<vmem>>, vector<6x16x16xf32>
    tpu.vector_store %arg2[%c0_8, %c0_9, %c0_10], %25 {strides = array<i32>} : memref<6x16x16xf32, #tpu.memory_space<vmem>>, vector<6x16x16xf32>,
    return
  }
  func.func @transform_0(%arg0: i32) -> (i32, i32, i32) {
    %c0_i32 = arith.constant 0 : i32
    %c0_i32_0 = arith.constant 0 : i32
    %c0_i32_1 = arith.constant 0 : i32
    %c0_i32_2 = arith.constant 0 : i32
    return %c0_i32, %c0_i32_0, %c0_i32_1 : i32, i32, i32
  }
  func.func @transform_1(%arg0: i32) -> (i32, i32, i32) {
    %c0_i32 = arith.constant 0 : i32
    %c0_i32_0 = arith.constant 0 : i32
    %c0_i32_1 = arith.constant 0 : i32
    %c0_i32_2 = arith.constant 0 : i32
    return %c0_i32, %c0_i32_0, %c0_i32_1 : i32, i32, i32
  }
}

</mosaic_0001>

<llo_original>
// kernel: tpu_custom_call.1
$region0: #{tpu_custom_call.1}
  #allocation0 [shape = 'u32[]', space=smem, size = 0x4, offset = 0x4, fixed_abs, tag = 'smem constant byte address 0x4 - core index']
  #allocation1 [shape = 'u32[144,128]{1,0:T(1,128)}', space=vmem, size = 0x12000, scoped, tag = 'internal scratch']
  %s0 = inlined_call_operand.hbm [shape: f32[6,18,18], index: 0, kind: input, shape index: {}]
  %s1 = inlined_call_operand.hbm [shape: f32[6,16,16], index: 1, kind: output, shape index: {}]
  %s2 = sld [smem:[#allocation0]]
  $region18: #{tpu_custom_call.1} parent=0
    _
  %s4 = ssub.s32 1, %s2
  %s5 = scalar_select 0, %s4, %s2
  $region1: #{tpu_custom_call.1} parent=0
    #allocation2 [shape = 'u8[73728]{0}', space=vmem, size = 0x12000, scoped, tag = 'input window, operand 0, single buffered']
    #allocation3 [shape = 's32[1]{0}', space=sflag, size = 0x4, scoped, tag = 'scoped memory for tpu_custom_call.1']
    #allocation4 [shape = 's32[1]{0}', space=sflag, size = 0x4, scoped, tag = 'scoped memory for tpu_custom_call.1']
    #allocation5 [shape = 'u8[49152]{0}', space=vmem, size = 0xc000, scoped, tag = 'output window, operand 0, single buffered']
    %6 = vsyncpa [#allocation3], 0
    %7 = vsyncpa [#allocation4], 0
    // Predicated region
    $region2: #{tpu_custom_call.1} parent=1 // pred_check
      _
    $region3: #{tpu_custom_call.1} parent=1 // pred_check_branch
      %9 = sbr.rel (0) target = $region5
    $region4: #{tpu_custom_call.1} parent=1 // pred_region
      %s11 = ssub.s32 2304, 2304
      %12 = vsyncadd [#allocation3], %s11
      %s13 = sshll.u32 [#allocation2], 4
      %s14 = int_to_ptr.vmem [resolvable:$true] %s13
      %19 = dma.hbm_to_vmem [thread:$0]  %s0, 2304, %s14, [#allocation3], 128, 128, 8
    $region5: #{tpu_custom_call.1} parent=1 // pred_fallthru
      _
    // Predicated region
    $region6: #{tpu_custom_call.1} parent=1 // pred_check
      _
    $region7: #{tpu_custom_call.1} parent=1 // pred_check_branch
      %21 = sbr.rel (0) target = $region9
    $region8: #{tpu_custom_call.1} parent=1 // pred_region
      %22 = dma.done [#allocation3], 2304
    $region9: #{tpu_custom_call.1} parent=1 // pred_fallthru
      _
    %v23 = vld [vmem:[#allocation2] sm:$0xff]
    %v24 = vld [vmem:[#allocation2 + $0x8] sm:$0xff]
    %v25 = vld [vmem:[#allocation2 + $0x10] sm:$0x3]
    %v26 = vld [vmem:[#allocation2 + $0x18] sm:$0xff]
    %v27 = vld [vmem:[#allocation2 + $0x20] sm:$0xff]
    %v28 = vld [vmem:[#allocation2 + $0x28] sm:$0x3]
    %v29 = vld [vmem:[#allocation2 + $0x30] sm:$0xff]
    %v30 = vld [vmem:[#allocation2 + $0x38] sm:$0xff]
    %v31 = vld [vmem:[#allocation2 + $0x40] sm:$0x3]
    %v32 = vld [vmem:[#allocation2 + $0x48] sm:$0xff]
    %v33 = vld [vmem:[#allocation2 + $0x50] sm:$0xff]
    %v34 = vld [vmem:[#allocation2 + $0x58] sm:$0x3]
    %v35 = vld [vmem:[#allocation2 + $0x60] sm:$0xff]
    %v36 = vld [vmem:[#allocation2 + $0x68] sm:$0xff]
    %v37 = vld [vmem:[#allocation2 + $0x70] sm:$0x3]
    %v38 = vld [vmem:[#allocation2 + $0x78] sm:$0xff]
    %v39 = vld [vmem:[#allocation2 + $0x80] sm:$0xff]
    %v40 = vld [vmem:[#allocation2 + $0x88] sm:$0x3]
    %v41 = vadd.f32 %v23, 0.0
    %v42 = vadd.f32 %v24, 0.0
    %v43 = vadd.f32 %v26, 0.0
    %v44 = vadd.f32 %v27, 0.0
    %v45 = vadd.f32 %v29, 0.0
    %v46 = vadd.f32 %v30, 0.0
    %v47 = vadd.f32 %v32, 0.0
    %v48 = vadd.f32 %v33, 0.0
    %v49 = vadd.f32 %v35, 0.0
    %v50 = vadd.f32 %v36, 0.0
    %v51 = vadd.f32 %v38, 0.0
    %v52 = vadd.f32 %v39, 0.0
    %65 = vrot.lane.b32.xlu0 %v23, 127
    %v66 = vpop.permute.xlu0 %65
    %67 = vrot.lane.b32.xlu0 %v24, 127
    %v68 = vpop.permute.xlu0 %67
    %69 = vrot.lane.b32.xlu0 %v26, 127
    %v70 = vpop.permute.xlu0 %69
    %71 = vrot.lane.b32.xlu0 %v27, 127
    %v72 = vpop.permute.xlu0 %71
    %73 = vrot.lane.b32.xlu0 %v29, 127
    %v74 = vpop.permute.xlu0 %73
    %75 = vrot.lane.b32.xlu0 %v30, 127
    %v76 = vpop.permute.xlu0 %75
    %77 = vrot.lane.b32.xlu0 %v32, 127
    %v78 = vpop.permute.xlu0 %77
    %79 = vrot.lane.b32.xlu0 %v33, 127
    %v80 = vpop.permute.xlu0 %79
    %81 = vrot.lane.b32.xlu0 %v35, 127
    %v82 = vpop.permute.xlu0 %81
    %83 = vrot.lane.b32.xlu0 %v36, 127
    %v84 = vpop.permute.xlu0 %83
    %85 = vrot.lane.b32.xlu0 %v38, 127
    %v86 = vpop.permute.xlu0 %85
    %87 = vrot.lane.b32.xlu0 %v39, 127
    %v88 = vpop.permute.xlu0 %87
    %v101 = vadd.f32 %v41, %v66
    %v102 = vadd.f32 %v42, %v68
    %v103 = vadd.f32 %v43, %v70
    %v104 = vadd.f32 %v44, %v72
    %v105 = vadd.f32 %v45, %v74
    %v106 = vadd.f32 %v46, %v76
    %v107 = vadd.f32 %v47, %v78
    %v108 = vadd.f32 %v48, %v80
    %v109 = vadd.f32 %v49, %v82
    %v110 = vadd.f32 %v50, %v84
    %v111 = vadd.f32 %v51, %v86
    %v112 = vadd.f32 %v52, %v88
    %v113 = vmul.f32 %v23, -1.0
    %v114 = vmul.f32 %v24, -1.0
    %v115 = vmul.f32 %v25, -1.0
    %v116 = vmul.f32 %v26, -1.0
    %v117 = vmul.f32 %v27, -1.0
    %v118 = vmul.f32 %v28, -1.0
    %v119 = vmul.f32 %v29, -1.0
    %v120 = vmul.f32 %v30, -1.0
    %v121 = vmul.f32 %v31, -1.0
    %v122 = vmul.f32 %v32, -1.0
    %v123 = vmul.f32 %v33, -1.0
    %v124 = vmul.f32 %v34, -1.0
    %v125 = vmul.f32 %v35, -1.0
    %v126 = vmul.f32 %v36, -1.0
    %v127 = vmul.f32 %v37, -1.0
    %v128 = vmul.f32 %v38, -1.0
    %v129 = vmul.f32 %v39, -1.0
    %v130 = vmul.f32 %v40, -1.0
    %vm149 = vcmask 1046528
    %v150 = vrot.slane %v113, 1
    %v151 = vrot.slane %v114, 1
    %v152 = vsel %vm149, %v150, %v151
    %v153 = vrot.slane %v115, 1
    %v154 = vsel %vm149, %v151, %v153
    %v155 = vrot.slane %v116, 1
    %v156 = vrot.slane %v117, 1
    %v157 = vsel %vm149, %v155, %v156
    %v158 = vrot.slane %v118, 1
    %v159 = vsel %vm149, %v156, %v158
    %v160 = vrot.slane %v119, 1
    %v161 = vrot.slane %v120, 1
    %v162 = vsel %vm149, %v160, %v161
    %v163 = vrot.slane %v121, 1
    %v164 = vsel %vm149, %v161, %v163
    %v165 = vrot.slane %v122, 1
    %v166 = vrot.slane %v123, 1
    %v167 = vsel %vm149, %v165, %v166
    %v168 = vrot.slane %v124, 1
    %v169 = vsel %vm149, %v166, %v168
    %v170 = vrot.slane %v125, 1
    %v171 = vrot.slane %v126, 1
    %v172 = vsel %vm149, %v170, %v171
    %v173 = vrot.slane %v127, 1
    %v174 = vsel %vm149, %v171, %v173
    %v175 = vrot.slane %v128, 1
    %v176 = vrot.slane %v129, 1
    %v177 = vsel %vm149, %v175, %v176
    %v178 = vrot.slane %v130, 1
    %v179 = vsel %vm149, %v176, %v178
    %180 = vrot.lane.b32.xlu0 %v152, 1
    %v181 = vpop.permute.xlu0 %180
    %182 = vrot.lane.b32.xlu0 %v154, 1
    %v183 = vpop.permute.xlu0 %182
    %184 = vrot.lane.b32.xlu0 %v157, 1
    %v185 = vpop.permute.xlu0 %184
    %186 = vrot.lane.b32.xlu0 %v159, 1
    %v187 = vpop.permute.xlu0 %186
    %188 = vrot.lane.b32.xlu0 %v162, 1
    %v189 = vpop.permute.xlu0 %188
    %190 = vrot.lane.b32.xlu0 %v164, 1
    %v191 = vpop.permute.xlu0 %190
    %192 = vrot.lane.b32.xlu0 %v167, 1
    %v193 = vpop.permute.xlu0 %192
    %194 = vrot.lane.b32.xlu0 %v169, 1
    %v195 = vpop.permute.xlu0 %194
    %196 = vrot.lane.b32.xlu0 %v172, 1
    %v197 = vpop.permute.xlu0 %196
    %198 = vrot.lane.b32.xlu0 %v174, 1
    %v199 = vpop.permute.xlu0 %198
    %200 = vrot.lane.b32.xlu0 %v177, 1
    %v201 = vpop.permute.xlu0 %200
    %202 = vrot.lane.b32.xlu0 %v179, 1
    %v203 = vpop.permute.xlu0 %202
    %v216 = vadd.f32 %v101, %v181
    %v217 = vadd.f32 %v102, %v183
    %v218 = vadd.f32 %v103, %v185
    %v219 = vadd.f32 %v104, %v187
    %v220 = vadd.f32 %v105, %v189
    %v221 = vadd.f32 %v106, %v191
    %v222 = vadd.f32 %v107, %v193
    %v223 = vadd.f32 %v108, %v195
    %v224 = vadd.f32 %v109, %v197
    %v225 = vadd.f32 %v110, %v199
    %v226 = vadd.f32 %v111, %v201
    %v227 = vadd.f32 %v112, %v203
    %v234 = vrot.slane %v23, 1
    %v235 = vrot.slane %v24, 1
    %v236 = vsel %vm149, %v234, %v235
    %v237 = vrot.slane %v25, 1
    %v238 = vsel %vm149, %v235, %v237
    %v239 = vrot.slane %v26, 1
    %v240 = vrot.slane %v27, 1
    %v241 = vsel %vm149, %v239, %v240
    %v242 = vrot.slane %v28, 1
    %v243 = vsel %vm149, %v240, %v242
    %v244 = vrot.slane %v29, 1
    %v245 = vrot.slane %v30, 1
    %v246 = vsel %vm149, %v244, %v245
    %v247 = vrot.slane %v31, 1
    %v248 = vsel %vm149, %v245, %v247
    %v249 = vrot.slane %v32, 1
    %v250 = vrot.slane %v33, 1
    %v251 = vsel %vm149, %v249, %v250
    %v252 = vrot.slane %v34, 1
    %v253 = vsel %vm149, %v250, %v252
    %v254 = vrot.slane %v35, 1
    %v255 = vrot.slane %v36, 1
    %v256 = vsel %vm149, %v254, %v255
    %v257 = vrot.slane %v37, 1
    %v258 = vsel %vm149, %v255, %v257
    %v259 = vrot.slane %v38, 1
    %v260 = vrot.slane %v39, 1
    %v261 = vsel %vm149, %v259, %v260
    %v262 = vrot.slane %v40, 1
    %v263 = vsel %vm149, %v260, %v262
    %264 = vrot.lane.b32.xlu0 %v236, 127
    %v265 = vpop.permute.xlu0 %264
    %266 = vrot.lane.b32.xlu0 %v238, 127
    %v267 = vpop.permute.xlu0 %266
    %268 = vrot.lane.b32.xlu0 %v241, 127
    %v269 = vpop.permute.xlu0 %268
    %270 = vrot.lane.b32.xlu0 %v243, 127
    %v271 = vpop.permute.xlu0 %270
    %272 = vrot.lane.b32.xlu0 %v246, 127
    %v273 = vpop.permute.xlu0 %272
    %274 = vrot.lane.b32.xlu0 %v248, 127
    %v275 = vpop.permute.xlu0 %274
    %276 = vrot.lane.b32.xlu0 %v251, 127
    %v277 = vpop.permute.xlu0 %276
    %278 = vrot.lane.b32.xlu0 %v253, 127
    %v279 = vpop.permute.xlu0 %278
    %280 = vrot.lane.b32.xlu0 %v256, 127
    %v281 = vpop.permute.xlu0 %280
    %282 = vrot.lane.b32.xlu0 %v258, 127
    %v283 = vpop.permute.xlu0 %282
    %284 = vrot.lane.b32.xlu0 %v261, 127
    %v285 = vpop.permute.xlu0 %284
    %286 = vrot.lane.b32.xlu0 %v263, 127
    %v287 = vpop.permute.xlu0 %286
    %v300 = vadd.f32 %v216, %v265
    %v301 = vadd.f32 %v217, %v267
    %v302 = vadd.f32 %v218, %v269
    %v303 = vadd.f32 %v219, %v271
    %v304 = vadd.f32 %v220, %v273
    %v305 = vadd.f32 %v221, %v275
    %v306 = vadd.f32 %v222, %v277
    %v307 = vadd.f32 %v223, %v279
    %v308 = vadd.f32 %v224, %v281
    %v309 = vadd.f32 %v225, %v283
    %v310 = vadd.f32 %v226, %v285
    %v311 = vadd.f32 %v227, %v287
    %vm312 = vcmask 1045504
    %v313 = vrot.slane %v113, 2
    %v314 = vrot.slane %v114, 2
    %v315 = vsel %vm312, %v313, %v314
    %v316 = vrot.slane %v115, 2
    %v317 = vsel %vm312, %v314, %v316
    %v318 = vrot.slane %v116, 2
    %v319 = vrot.slane %v117, 2
    %v320 = vsel %vm312, %v318, %v319
    %v321 = vrot.slane %v118, 2
    %v322 = vsel %vm312, %v319, %v321
    %v323 = vrot.slane %v119, 2
    %v324 = vrot.slane %v120, 2
    %v325 = vsel %vm312, %v323, %v324
    %v326 = vrot.slane %v121, 2
    %v327 = vsel %vm312, %v324, %v326
    %v328 = vrot.slane %v122, 2
    %v329 = vrot.slane %v123, 2
    %v330 = vsel %vm312, %v328, %v329
    %v331 = vrot.slane %v124, 2
    %v332 = vsel %vm312, %v329, %v331
    %v333 = vrot.slane %v125, 2
    %v334 = vrot.slane %v126, 2
    %v335 = vsel %vm312, %v333, %v334
    %v336 = vrot.slane %v127, 2
    %v337 = vsel %vm312, %v334, %v336
    %v338 = vrot.slane %v128, 2
    %v339 = vrot.slane %v129, 2
    %v340 = vsel %vm312, %v338, %v339
    %v341 = vrot.slane %v130, 2
    %v342 = vsel %vm312, %v339, %v341
    %343 = vrot.lane.b32.xlu0 %v315, 1
    %v344 = vpop.permute.xlu0 %343
    %345 = vrot.lane.b32.xlu0 %v317, 1
    %v346 = vpop.permute.xlu0 %345
    %347 = vrot.lane.b32.xlu0 %v320, 1
    %v348 = vpop.permute.xlu0 %347
    %349 = vrot.lane.b32.xlu0 %v322, 1
    %v350 = vpop.permute.xlu0 %349
    %351 = vrot.lane.b32.xlu0 %v325, 1
    %v352 = vpop.permute.xlu0 %351
    %353 = vrot.lane.b32.xlu0 %v327, 1
    %v354 = vpop.permute.xlu0 %353
    %355 = vrot.lane.b32.xlu0 %v330, 1
    %v356 = vpop.permute.xlu0 %355
    %357 = vrot.lane.b32.xlu0 %v332, 1
    %v358 = vpop.permute.xlu0 %357
    %359 = vrot.lane.b32.xlu0 %v335, 1
    %v360 = vpop.permute.xlu0 %359
    %361 = vrot.lane.b32.xlu0 %v337, 1
    %v362 = vpop.permute.xlu0 %361
    %363 = vrot.lane.b32.xlu0 %v340, 1
    %v364 = vpop.permute.xlu0 %363
    %365 = vrot.lane.b32.xlu0 %v342, 1
    %v366 = vpop.permute.xlu0 %365
    %v379 = vadd.f32 %v300, %v344
    %v380 = vadd.f32 %v301, %v346
    %v381 = vadd.f32 %v302, %v348
    %v382 = vadd.f32 %v303, %v350
    %v383 = vadd.f32 %v304, %v352
    %v384 = vadd.f32 %v305, %v354
    %v385 = vadd.f32 %v306, %v356
    %v386 = vadd.f32 %v307, %v358
    %v387 = vadd.f32 %v308, %v360
    %v388 = vadd.f32 %v309, %v362
    %v389 = vadd.f32 %v310, %v364
    %v390 = vadd.f32 %v311, %v366
    %v403 = vadd.f32 %v379, %v315
    %v404 = vadd.f32 %v380, %v317
    %v405 = vadd.f32 %v381, %v320
    %v406 = vadd.f32 %v382, %v322
    %v407 = vadd.f32 %v383, %v325
    %v408 = vadd.f32 %v384, %v327
    %v409 = vadd.f32 %v385, %v330
    %v410 = vadd.f32 %v386, %v332
    %v411 = vadd.f32 %v387, %v335
    %v412 = vadd.f32 %v388, %v337
    %v413 = vadd.f32 %v389, %v340
    %v414 = vadd.f32 %v390, %v342
    %427 = vrot.lane.b32.xlu0 %v403, 127
    %v428 = vpop.permute.xlu0 %427
    %429 = vrot.lane.b32.xlu0 %v404, 127
    %v430 = vpop.permute.xlu0 %429
    %431 = vrot.lane.b32.xlu0 %v405, 127
    %v432 = vpop.permute.xlu0 %431
    %433 = vrot.lane.b32.xlu0 %v406, 127
    %v434 = vpop.permute.xlu0 %433
    %435 = vrot.lane.b32.xlu0 %v407, 127
    %v436 = vpop.permute.xlu0 %435
    %437 = vrot.lane.b32.xlu0 %v408, 127
    %v438 = vpop.permute.xlu0 %437
    %439 = vrot.lane.b32.xlu0 %v409, 127
    %v440 = vpop.permute.xlu0 %439
    %441 = vrot.lane.b32.xlu0 %v410, 127
    %v442 = vpop.permute.xlu0 %441
    %443 = vrot.lane.b32.xlu0 %v411, 127
    %v444 = vpop.permute.xlu0 %443
    %445 = vrot.lane.b32.xlu0 %v412, 127
    %v446 = vpop.permute.xlu0 %445
    %447 = vrot.lane.b32.xlu0 %v413, 127
    %v448 = vpop.permute.xlu0 %447
    %449 = vrot.lane.b32.xlu0 %v414, 127
    %v450 = vpop.permute.xlu0 %449
    %vm463 = vcmask 130048
    %464 = vst.msk [vmem:[#allocation5] sm:$0xff] %vm463, %v428
    %465 = vst.msk [vmem:[#allocation5 + $0x8] sm:$0xff] %vm463, %v430
    %466 = vst.msk [vmem:[#allocation5 + $0x10] sm:$0xff] %vm463, %v432
    %467 = vst.msk [vmem:[#allocation5 + $0x18] sm:$0xff] %vm463, %v434
    %468 = vst.msk [vmem:[#allocation5 + $0x20] sm:$0xff] %vm463, %v436
    %469 = vst.msk [vmem:[#allocation5 + $0x28] sm:$0xff] %vm463, %v438
    %470 = vst.msk [vmem:[#allocation5 + $0x30] sm:$0xff] %vm463, %v440
    %471 = vst.msk [vmem:[#allocation5 + $0x38] sm:$0xff] %vm463, %v442
    %472 = vst.msk [vmem:[#allocation5 + $0x40] sm:$0xff] %vm463, %v444
    %473 = vst.msk [vmem:[#allocation5 + $0x48] sm:$0xff] %vm463, %v446
    %474 = vst.msk [vmem:[#allocation5 + $0x50] sm:$0xff] %vm463, %v448
    %475 = vst.msk [vmem:[#allocation5 + $0x58] sm:$0xff] %vm463, %v450
    // Predicated region
    $region10: #{tpu_custom_call.1} parent=1 // pred_check
      _
    $region11: #{tpu_custom_call.1} parent=1 // pred_check_branch
      %477 = sbr.rel (0) target = $region13
    $region12: #{tpu_custom_call.1} parent=1 // pred_region
      %s479 = ssub.s32 1536, 1536
      %480 = vsyncadd [#allocation4], %s479
      %s481 = sshll.u32 [#allocation5], 4
      %s482 = int_to_ptr.vmem [resolvable:$true] %s481
      %487 = dma.vmem_to_hbm [thread:$0]  %s482, 1536, %s1, [#allocation4], 128, 128, 8
    $region13: #{tpu_custom_call.1} parent=1 // pred_fallthru
      _
    // Predicated region
    $region14: #{tpu_custom_call.1} parent=1 // pred_check
      _
    $region15: #{tpu_custom_call.1} parent=1 // pred_check_branch
      %489 = sbr.rel (0) target = $region17
    $region16: #{tpu_custom_call.1} parent=1 // pred_region
      %490 = dma.done [#allocation4], 1536
    $region17: #{tpu_custom_call.1} parent=1 // pred_fallthru
      _
    %491 = vsyncpa [#allocation3], 1
    %492 = vsyncpa [#allocation4], 1

</llo_original>
